<compile_context>
chip_gen: v6e
topology: v6e:2x2x1
jax: 0.10.0
libtpu: 0.0.40
codegen_flags: <defaults>
</compile_context>

<pallas_src>
import functools

import jax
import jax.numpy as jnp
import numpy as np
from jax.experimental import pallas as pl
from jax.experimental.pallas import tpu as pltpu

_F32 = jnp.float32
_LANE = 128
_TARGET_BLOCK_BYTES = 2 * 1024 * 1024      # padded bytes per input block (~85% of HBM
                                           # roofline per the measured tile sweep, and
                                           # leaves room for f32 temporaries on v7x)
_VMEM_LIMIT_BYTES = 32 * 1024 * 1024       # safe on v5e/v6e (128 MiB) and v7x (64 MiB)
_SMALL_INPUT_BYTES = 64 * 1024             # below this, plain XLA is cheaper


def _cdiv(a, b):
    return -(-a // b)


def _round_up(a, b):
    return _cdiv(a, b) * b


def _sublane_multiple(dtype):
    # f32 -> 8, bf16/fp16 -> 16, int8/fp8 -> 32 (packed sublane tiling).
    return max(8, 32 // np.dtype(dtype).itemsize)


# ----------------------------------------------------------------------------
# Path 1: 2-D (rows, C) input -- softmax axis on lanes, rows tiled on sublanes.
# ----------------------------------------------------------------------------
def _ne_rows_kernel(x_ref, o_ref, *, tail):
    """x_ref: (tb, C) block.  o_ref: (1, 1) f32 resident accumulator."""
    i = pl.program_id(0)

    @pl.when(i == 0)
    def _init():
        o_ref[...] = jnp.zeros_like(o_ref)

    x = x_ref[...].astype(_F32)
    m = jnp.max(x, axis=1, keepdims=True)
    z = x - m
    e = jnp.exp(z)
    s = jnp.sum(e, axis=1, keepdims=True)               # (tb, 1)
    t = jnp.sum(e * z, axis=1, keepdims=True)           # (tb, 1)
    contrib = t / s - jnp.log(s)                        # per-row sum_j p*log p

    def _acc(v):                                        # v: (rows, 1)
        o_ref[...] += jnp.sum(v, axis=0, keepdims=True)

    if tail == 0:
        _acc(contrib)
    else:
        last = pl.num_programs(0) - 1

        @pl.when(i != last)
        def _full():
            _acc(contrib)

        @pl.when(i == last)
        def _edge():                                    # static slice drops OOB rows
            _acc(contrib[:tail])


def _neg_entropy_sum_2d(x2d, target_block_bytes):
    rows, c = x2d.shape
    item = np.dtype(x2d.dtype).itemsize
    sub = _sublane_multiple(x2d.dtype)
    row_bytes = _round_up(c, _LANE) * item               # VMEM-padded bytes per row
    tb_max = max(sub, (target_block_bytes // row_bytes) // sub * sub)
    if rows <= tb_max:
        tb, n_tiles = rows, 1                            # full-dim block (always legal)
    else:
        n_tiles = _cdiv(rows, tb_max)                    # balance tiles first, then
        tb = min(tb_max, _round_up(_cdiv(rows, n_tiles), sub))   # round to sublane mult
        n_tiles = _cdiv(rows, tb)
    block_bytes = _round_up(max(tb, 1), sub) * row_bytes
    if 2 * block_bytes > (_VMEM_LIMIT_BYTES * 3) // 4:   # double-buffered input + headroom
        return None
    tail = rows - (n_tiles - 1) * tb
    tail = 0 if tail == tb else tail

    out = pl.pallas_call(
        functools.partial(_ne_rows_kernel, tail=tail),
        out_shape=jax.ShapeDtypeStruct((1, 1), _F32),
        grid_spec=pltpu.PrefetchScalarGridSpec(
            num_scalar_prefetch=0,
            grid=(n_tiles,),
            in_specs=[pl.BlockSpec((tb, c), lambda i: (i, 0))],
            out_specs=pl.BlockSpec((1, 1), lambda i: (0, 0)),   # resident accumulator
        ),
        compiler_params=pltpu.CompilerParams(
            dimension_semantics=("arbitrary",),
            vmem_limit_bytes=_VMEM_LIMIT_BYTES,
        ),
    )(x2d)
    return out[0, 0]


# ----------------------------------------------------------------------------
# Path 2: rank >= 3 input (N, C, ...) -- read in native layout, NO transpose.
# Channels (softmax axis) live on sublanes; flattened trailing dims on lanes;
# the batch dim is tiled so each grid step moves ~_TARGET_BLOCK_BYTES.
# ----------------------------------------------------------------------------
def _ne_chan_kernel(x_ref, o_ref, *, b_tail, m_tail):
    """x_ref: (tb_b, C, tm) block.  o_ref: (1, 1, 1) f32 resident accumulator."""
    bi = pl.program_id(0)
    ji = pl.program_id(1)

    @pl.when(jnp.logical_and(bi == 0, ji == 0))
    def _init():
        o_ref[...] = jnp.zeros_like(o_ref)

    x = x_ref[...].astype(_F32)
    m = jnp.max(x, axis=1, keepdims=True)
    z = x - m
    e = jnp.exp(z)
    s = jnp.sum(e, axis=1, keepdims=True)                # (tb_b, 1, tm)
    t = jnp.sum(e * z, axis=1, keepdims=True)            # (tb_b, 1, tm)
    contrib = t / s - jnp.log(s)                         # per-(b, spatial) sum_c p*log p

    def _acc(v):                                         # v: (nb, 1, nm)
        v = jnp.sum(v, axis=0, keepdims=True)            # fold batch-tile dim (vector adds)
        o_ref[...] += jnp.sum(v, axis=2, keepdims=True)  # fold lane dim (XLU)

    if b_tail == 0 and m_tail == 0:
        _acc(contrib)
    elif m_tail:                                         # tail on the lane (spatial) axis
        last = pl.num_programs(1) - 1

        @pl.when(ji != last)
        def _full():
            _acc(contrib)

        @pl.when(ji == last)
        def _edge():
            _acc(contrib[:, :, :m_tail])
    else:                                                # tail on the batch-tile axis
        last = pl.num_programs(0) - 1

        @pl.when(bi != last)
        def _full():
            _acc(contrib)

        @pl.when(bi == last)
        def _edge():
            _acc(contrib[:b_tail])


def _neg_entropy_sum_nd(x, target_block_bytes):
    b0, c = x.shape[0], x.shape[1]
    m_cols = int(np.prod(x.shape[2:]))
    x3 = x.reshape(b0, c, m_cols)                        # contiguous merge: no copy
    item = np.dtype(x.dtype).itemsize
    sub = _sublane_multiple(x.dtype)
    c_pad = _round_up(c, sub)                            # channels live on sublanes
    full_m_bytes = c_pad * _round_up(m_cols, _LANE) * item

    if full_m_bytes <= target_block_bytes:
        # Whole spatial extent per step; tile the batch to hit the byte target.
        tm, nm, m_tail = m_cols, 1, 0
        tbb_max = max(1, target_block_bytes // full_m_bytes)
        if b0 <= tbb_max:
            tbb, nb, b_tail = b0, 1, 0
        else:
            nb = _cdiv(b0, tbb_max)
            tbb = _cdiv(b0, nb)                          # balanced batch tiles
            nb = _cdiv(b0, tbb)
            b_tail = b0 - (nb - 1) * tbb
            b_tail = 0 if b_tail == tbb else b_tail
        block_bytes = tbb * full_m_bytes
    else:
        # A single batch element exceeds the target: tile the lane (spatial) axis.
        tbb, nb, b_tail = 1, b0, 0
        lane_bytes = c_pad * _LANE * item
        tm_max = max(_LANE, (target_block_bytes // lane_bytes) * _LANE)
        if m_cols <= tm_max:
            tm, nm, m_tail = m_cols, 1, 0
        else:
            nm = _cdiv(m_cols, tm_max)                   # balance tiles first
            tm = min(tm_max, _round_up(_cdiv(m_cols, nm), _LANE))
            nm = _cdiv(m_cols, tm)
            m_tail = m_cols - (nm - 1) * tm
            m_tail = 0 if m_tail == tm else m_tail
        block_bytes = c_pad * _round_up(tm, _LANE) * item
    if 2 * block_bytes > (_VMEM_LIMIT_BYTES * 3) // 4:   # double-buffered input + headroom
        return None
    assert not (b_tail and m_tail)                       # planner never produces both

    out = pl.pallas_call(
        functools.partial(_ne_chan_kernel, b_tail=b_tail, m_tail=m_tail),
        out_shape=jax.ShapeDtypeStruct((1, 1, 1), _F32),
        grid_spec=pltpu.PrefetchScalarGridSpec(
            num_scalar_prefetch=0,
            grid=(nb, nm),
            in_specs=[pl.BlockSpec((tbb, c, tm), lambda bi, ji: (bi, 0, ji))],
            out_specs=pl.BlockSpec((1, 1, 1), lambda bi, ji: (0, 0, 0)),
        ),
        compiler_params=pltpu.CompilerParams(
            dimension_semantics=("arbitrary", "arbitrary"),
            vmem_limit_bytes=_VMEM_LIMIT_BYTES,
        ),
    )(x3)
    return out[0, 0, 0]


# ----------------------------------------------------------------------------
# Public entry point + pure-JAX fallback / reference.
# ----------------------------------------------------------------------------
def _neg_entropy_xla(x):
    xf = x.astype(_F32)
    p = jax.nn.softmax(xf, axis=1)
    logp = jax.nn.log_softmax(xf, axis=1)
    return -jnp.mean(p * logp)


def neg_entropy_loss(x, *, force_pallas=False, target_block_bytes=_TARGET_BLOCK_BYTES):
    """Pallas implementation of Neg_Entropy_Loss.forward (softmax over axis 1)."""
    if x.ndim < 2:
        raise ValueError(f"need rank >= 2, got rank {x.ndim}")
    nbytes = x.size * np.dtype(x.dtype).itemsize
    if not force_pallas and nbytes < _SMALL_INPUT_BYTES:
        # Kilobyte-scale tensors (e.g. Encoder's S): kernel launch overhead dominates
        # and XLA fuses this loss into the surrounding Encoder graph for free.
        return _neg_entropy_xla(x)
    if x.ndim == 2:
        total = _neg_entropy_sum_2d(x, target_block_bytes)
    else:
        total = _neg_entropy_sum_nd(x, target_block_bytes)
    if total is None:         # pathological C: minimum block cannot fit VMEM budget
        return _neg_entropy_xla(x)
    return -total / jnp.float32(x.size)


def _reference(x):
    return _neg_entropy_xla(x)


if __name__ == "__main__":
    key = jax.random.PRNGKey(0)

    def check(x, **kw):
        got = jax.block_until_ready(neg_entropy_loss(x, **kw))
        ref = jax.block_until_ready(_reference(x))
        assert np.allclose(np.asarray(got), np.asarray(ref), rtol=5e-5, atol=2e-6), (
            x.shape, kw, float(got), float(ref))

    # Encoder-consistent shapes: S = (b, dl, 3, ps, ps) with b=2, dl=4, ps=4.
    key, k = jax.random.split(key)
    s5 = jax.random.normal(k, (2, 4, 3, 4, 4), jnp.float32)
    check(s5)                               # small-input fallback (XLA) dispatch
    check(s5, force_pallas=True)            # ND Pallas path, single tile

    key, k = jax.random.split(key)
    check(jax.random.normal(k, (2, 4, 16, 16), jnp.float32), force_pallas=True)   # NCHW
    key, k = jax.random.split(key)
    check(jax.random.normal(k, (16, 32), jnp.float32), force_pallas=True)         # logits
    key, k = jax.random.split(key)
    check(jax.random.normal(k, (13, 10), jnp.float32), force_pallas=True)         # ragged 2-D

    # Multi-tile + edge-tile paths (small target_block_bytes forces tiling on small data).
    key, k = jax.random.split(key)
    check(jax.random.normal(k, (1000, 50), jnp.float32),
          force_pallas=True, target_block_bytes=32 * 1024)        # 2-D row tail (f32)
    key, k = jax.random.split(key)
    check(jax.random.normal(k, (1000, 48), jnp.float32).astype(jnp.bfloat16),
          force_pallas=True, target_block_bytes=16 * 1024)        # 2-D row tail (bf16, sub=16)
    key, k = jax.random.split(key)
    check(jax.random.normal(k, (3, 4, 3, 10, 10), jnp.float32),
          force_pallas=True, target_block_bytes=8 * 1024)         # ND spatial (lane) tail
    key, k = jax.random.split(key)
    check(jax.random.normal(k, (7, 4, 16, 16), jnp.float32),
          force_pallas=True, target_block_bytes=24 * 1024)        # ND batch-tile tail

    # Default dispatch (above the small-input threshold -> Pallas with default tiles).
    key, k = jax.random.split(key)
    check(jax.random.normal(k, (4096, 128), jnp.float32))                         # 2 MiB 2-D
    key, k = jax.random.split(key)
    check(jax.random.normal(k, (128, 4, 16, 16), jnp.float32))                    # 512 KiB NCHW

    print("KERNEL_OK")
</pallas_src>

<mosaic_0001>
module attributes {stable_mosaic.version = 11 : i64} {
  func.func @_ne_chan_kernel(%arg0: i32, %arg1: i32, %arg2: memref<2x4x48xf32, #tpu.memory_space<vmem>>, %arg3: memref<1x1x1xf32, #tpu.memory_space<vmem>>) attributes {dimension_semantics = [#tpu.dimension_semantics<arbitrary>, #tpu.dimension_semantics<arbitrary>], iteration_bounds = array<i64: 1, 1>, scalar_prefetch = 0 : i64, scratch_operands = 0 : i64, tpu.core_type = #tpu.core_type<tc>, window_params = [{transform_indices = @transform_0, window_bounds = array<i64: 2, 4, 48>}, {pipeline_mode = #tpu.pipeline_mode<synchronous>, transform_indices = @transform_1, window_bounds = array<i64: 1, 1, 1>}]} {
    %c0_i32 = arith.constant 0 : i32
    %0 = arith.cmpi eq, %arg0, %c0_i32 : i32
    %c0_i32_0 = arith.constant 0 : i32
    %1 = arith.cmpi eq, %arg1, %c0_i32_0 : i32
    %2 = arith.andi %0, %1 : i1
    %3 = arith.extui %2 : i1 to i32
    %c0_i32_1 = arith.constant 0 : i32
    %4 = arith.cmpi ne, %3, %c0_i32_1 : i32
    scf.if %4 {
      %cst_14 = arith.constant 0.000000e+00 : f32
      %26 = vector.broadcast %cst_14 : f32 to vector<1x1x1xf32>
      %c0_15 = arith.constant 0 : index
      %c0_16 = arith.constant 0 : index
      %c0_17 = arith.constant 0 : index
      %27 = vector.load %arg3[%c0_15, %c0_16, %c0_17] : memref<1x1x1xf32, #tpu.memory_space<vmem>>, vector<1x1x1xf32>
      tpu.vector_store %arg3[%c0_15, %c0_16, %c0_17], %26 {strides = array<i32>} : memref<1x1x1xf32, #tpu.memory_space<vmem>>, vector<1x1x1xf32>,
    } else {
    }
    %c0 = arith.constant 0 : index
    %c0_2 = arith.constant 0 : index
    %c0_3 = arith.constant 0 : index
    %5 = vector.load %arg2[%c0, %c0_2, %c0_3] : memref<2x4x48xf32, #tpu.memory_space<vmem>>, vector<2x4x48xf32>
    %cst = arith.constant dense<0xFF800000> : vector<2x48xf32>
    %6 = vector.multi_reduction <maximumf>, %5, %cst [1] : vector<2x4x48xf32> to vector<2x48xf32>
    %7 = vector.shape_cast %6 : vector<2x48xf32> to vector<2x1x48xf32>
    %8 = vector.broadcast %7 : vector<2x1x48xf32> to vector<2x4x48xf32>
    %9 = arith.subf %5, %8 : vector<2x4x48xf32>
    %10 = math.exp %9 : vector<2x4x48xf32>
    %cst_4 = arith.constant dense<0.000000e+00> : vector<2x48xf32>
    %11 = vector.multi_reduction <add>, %10, %cst_4 [1] : vector<2x4x48xf32> to vector<2x48xf32>
    %12 = vector.shape_cast %11 : vector<2x48xf32> to vector<2x1x48xf32>
    %13 = arith.mulf %10, %9 : vector<2x4x48xf32>
    %cst_5 = arith.constant dense<0.000000e+00> : vector<2x48xf32>
    %14 = vector.multi_reduction <add>, %13, %cst_5 [1] : vector<2x4x48xf32> to vector<2x48xf32>
    %15 = vector.shape_cast %14 : vector<2x48xf32> to vector<2x1x48xf32>
    %16 = arith.divf %15, %12 : vector<2x1x48xf32>
    %17 = math.log %12 : vector<2x1x48xf32>
    %18 = arith.subf %16, %17 : vector<2x1x48xf32>
    %cst_6 = arith.constant dense<0.000000e+00> : vector<1x48xf32>
    %19 = vector.multi_reduction <add>, %18, %cst_6 [0] : vector<2x1x48xf32> to vector<1x48xf32>
    %20 = vector.shape_cast %19 : vector<1x48xf32> to vector<1x1x48xf32>
    %c0_7 = arith.constant 0 : index
    %c0_8 = arith.constant 0 : index
    %c0_9 = arith.constant 0 : index
    %21 = vector.load %arg3[%c0_7, %c0_8, %c0_9] : memref<1x1x1xf32, #tpu.memory_space<vmem>>, vector<1x1x1xf32>
    %cst_10 = arith.constant dense<0.000000e+00> : vector<1x1xf32>
    %22 = vector.multi_reduction <add>, %20, %cst_10 [2] : vector<1x1x48xf32> to vector<1x1xf32>
    %23 = vector.shape_cast %22 : vector<1x1xf32> to vector<1x1x1xf32>
    %24 = arith.addf %21, %23 : vector<1x1x1xf32>
    %c0_11 = arith.constant 0 : index
    %c0_12 = arith.constant 0 : index
    %c0_13 = arith.constant 0 : index
    %25 = vector.load %arg3[%c0_11, %c0_12, %c0_13] : memref<1x1x1xf32, #tpu.memory_space<vmem>>, vector<1x1x1xf32>
    tpu.vector_store %arg3[%c0_11, %c0_12, %c0_13], %24 {strides = array<i32>} : memref<1x1x1xf32, #tpu.memory_space<vmem>>, vector<1x1x1xf32>,
    return
  }
  func.func @transform_0(%arg0: i32, %arg1: i32) -> (i32, i32, i32) {
    %c0_i32 = arith.constant 0 : i32
    %c0_i32_0 = arith.constant 0 : i32
    return %arg0, %c0_i32, %arg1 : i32, i32, i32
  }
  func.func @transform_1(%arg0: i32, %arg1: i32) -> (i32, i32, i32) {
    %c0_i32 = arith.constant 0 : i32
    %c0_i32_0 = arith.constant 0 : i32
    %c0_i32_1 = arith.constant 0 : i32
    %c0_i32_2 = arith.constant 0 : i32
    return %c0_i32, %c0_i32_0, %c0_i32_1 : i32, i32, i32
  }
}

</mosaic_0001>

<llo_original>
// kernel: tpu_custom_call.1
$region0: #{tpu_custom_call.1}
  #allocation0 [shape = 'u32[]', space=smem, size = 0x4, offset = 0x4, fixed_abs, tag = 'smem constant byte address 0x4 - core index']
  #allocation1 [shape = 'u32[144,128]{1,0:T(1,128)}', space=vmem, size = 0x12000, scoped, tag = 'internal scratch']
  %s0 = inlined_call_operand.hbm [shape: f32[2,4,48], index: 0, kind: input, shape index: {}]
  %s1 = inlined_call_operand.hbm [shape: f32[1,1,1], index: 1, kind: output, shape index: {}]
  %s2 = sld [smem:[#allocation0]]
  $region22: #{tpu_custom_call.1} parent=0
    _
  %s4 = ssub.s32 1, %s2
  %s5 = scalar_select 0, %s4, %s2
  $region1: #{tpu_custom_call.1} parent=0
    #allocation2 [shape = 'u8[4096]{0}', space=vmem, size = 0x1000, scoped, tag = 'input window, operand 0, single buffered']
    #allocation3 [shape = 's32[1]{0}', space=sflag, size = 0x4, scoped, tag = 'scoped memory for tpu_custom_call.1']
    #allocation4 [shape = 's32[1]{0}', space=sflag, size = 0x4, scoped, tag = 'scoped memory for tpu_custom_call.1']
    #allocation5 [shape = 'u8[512]{0}', space=vmem, size = 0x400, scoped, tag = 'output window, operand 0, single buffered']
    %6 = vsyncpa [#allocation3], 0
    %7 = vsyncpa [#allocation4], 0
    // Predicated region
    $region2: #{tpu_custom_call.1} parent=1 // pred_check
      _
    $region3: #{tpu_custom_call.1} parent=1 // pred_check_branch
      %9 = sbr.rel (0) target = $region5
    $region4: #{tpu_custom_call.1} parent=1 // pred_region
      %s11 = ssub.s32 128, 128
      %12 = vsyncadd [#allocation3], %s11
      %s13 = sshll.u32 [#allocation2], 4
      %s14 = int_to_ptr.vmem [resolvable:$true] %s13
      %19 = dma.hbm_to_vmem [thread:$0]  %s0, 128, %s14, [#allocation3], 64, 64, 4
    $region5: #{tpu_custom_call.1} parent=1 // pred_fallthru
      _
    // Predicated region
    $region6: #{tpu_custom_call.1} parent=1 // pred_check
      _
    $region7: #{tpu_custom_call.1} parent=1 // pred_check_branch
      %21 = sbr.rel (0) target = $region9
    $region8: #{tpu_custom_call.1} parent=1 // pred_region
      %22 = dma.done [#allocation3], 128
    $region9: #{tpu_custom_call.1} parent=1 // pred_fallthru
      _
    %p23 = scmp.eq.s32.totalorder 0, 0
    %p24 = scmp.eq.s32.totalorder 0, 0
    %p25 = pnand %p23, %p24
    %p26 = pneg %p25
    // Predicated region
    $region10: #{tpu_custom_call.1} parent=1 // pred_check
      _
    $region11: #{tpu_custom_call.1} parent=1 // pred_check_branch
      %28 = sbr.rel (%p25) target = $region13
    $region12: #{tpu_custom_call.1} parent=1 // pred_region
      %vm29 = vcmask 0
      %30 = vst.msk [vmem:[#allocation5] sm:$0x1] %vm29, 0.0
    $region13: #{tpu_custom_call.1} parent=1 // pred_fallthru
      _
    %v31 = vld [vmem:[#allocation2] sm:$0xf]
    %v32 = vld [vmem:[#allocation2 + $0x4] sm:$0xf]
    %vm33 = vcmask 388096
    %v34 = vsel %vm33, %v31, -inf
    %v35 = vrot.slane %v34, 4
    %v36 = vmax.f32 %v34, %v35
    %v37 = vrot.slane %v36, 2
    %v38 = vmax.f32 %v36, %v37
    %v39 = vrot.slane %v38, 1
    %v40 = vmax.f32 %v38, %v39
    %v41 = vsel %vm33, %v32, -inf
    %v42 = vrot.slane %v41, 4
    %v43 = vmax.f32 %v41, %v42
    %v44 = vrot.slane %v43, 2
    %v45 = vmax.f32 %v43, %v44
    %v46 = vrot.slane %v45, 1
    %v47 = vmax.f32 %v45, %v46
    %v48 = vsub.f32 %v31, %v40
    %v49 = vsub.f32 %v32, %v47
    %v50 = vmul.f32 %v48, 1.442695
    %v51 = vpow.pop %v50
    %v52 = vmul.f32 %v49, 1.442695
    %v53 = vpow.pop %v52
    %v54 = vsel %vm33, %v51, 0.0
    %v55 = vrot.slane %v54, 4
    %v56 = vadd.f32 %v54, %v55
    %v57 = vrot.slane %v56, 2
    %v58 = vadd.f32 %v56, %v57
    %v59 = vrot.slane %v58, 1
    %v60 = vadd.f32 %v58, %v59
    %v61 = vsel %vm33, %v53, 0.0
    %v62 = vrot.slane %v61, 4
    %v63 = vadd.f32 %v61, %v62
    %v64 = vrot.slane %v63, 2
    %v65 = vadd.f32 %v63, %v64
    %v66 = vrot.slane %v65, 1
    %v67 = vadd.f32 %v65, %v66
    %v68 = vmul.f32 %v51, %v48
    %v69 = vmul.f32 %v53, %v49
    %v70 = vsel %vm33, %v68, 0.0
    %v71 = vrot.slane %v70, 4
    %v72 = vadd.f32 %v70, %v71
    %v73 = vrot.slane %v72, 2
    %v74 = vadd.f32 %v72, %v73
    %v75 = vrot.slane %v74, 1
    %v76 = vadd.f32 %v74, %v75
    %v77 = vsel %vm33, %v69, 0.0
    %v78 = vrot.slane %v77, 4
    %v79 = vadd.f32 %v77, %v78
    %v80 = vrot.slane %v79, 2
    %v81 = vadd.f32 %v79, %v80
    %v82 = vrot.slane %v81, 1
    %v83 = vadd.f32 %v81, %v82
    %v84 = vrcp.pop %v60
    %v85 = vmul.f32 %v76, %v84
    %v86 = vrcp.pop %v67
    %v87 = vmul.f32 %v83, %v86
    %v88 = vlog2.pop %v60
    %v89 = vmul.f32 %v88, 0.6931472
    %v90 = vlog2.pop %v67
    %v91 = vmul.f32 %v90, 0.6931472
    %v92 = vsub.f32 %v85, %v89
    %v93 = vsub.f32 %v87, %v91
    %vm94 = vcmask 392192
    %v95 = vsel %vm94, %v92, 0.0
    %v96 = vsel %vm94, %v93, 0.0
    %v97 = vadd.f32 %v95, %v96
    %v98 = vld [vmem:[#allocation5] sm:$0x1]
    %v99 = vsel %vm94, %v97, 0.0
    %100 = vadd.xlane.f32.xlu0 %v99
    %v101 = vpop.xlane.xlu0 %100
    %v102 = vadd.f32 %v98, %v101
    %vm103 = vcmask 0
    %104 = vst.msk [vmem:[#allocation5] sm:$0x1] %vm103, %v102
    // Predicated region
    $region14: #{tpu_custom_call.1} parent=1 // pred_check
      _
    $region15: #{tpu_custom_call.1} parent=1 // pred_check_branch
      %106 = sbr.rel (0) target = $region17
    $region16: #{tpu_custom_call.1} parent=1 // pred_region
      %s108 = ssub.s32 16, 16
      %109 = vsyncadd [#allocation4], %s108
      %s111 = sshll.u32 [#allocation5], 4
      %s112 = int_to_ptr.vmem [resolvable:$true] %s111
      %114 = dma.vmem_to_hbm [thread:$0]  %s112, 16, %s1, [#allocation4]
    $region17: #{tpu_custom_call.1} parent=1 // pred_fallthru
      _
    // Predicated region
    $region18: #{tpu_custom_call.1} parent=1 // pred_check
      _
    $region19: #{tpu_custom_call.1} parent=1 // pred_check_branch
      %116 = sbr.rel (0) target = $region21
    $region20: #{tpu_custom_call.1} parent=1 // pred_region
      %117 = dma.done [#allocation4], 16
    $region21: #{tpu_custom_call.1} parent=1 // pred_fallthru
      _
    %118 = vsyncpa [#allocation3], 1
    %119 = vsyncpa [#allocation4], 1

</llo_original>
